<compile_context>
chip_gen: v5e
topology: v5e:2x2
jax: 0.10.0
libtpu: 0.0.40
codegen_flags: <defaults>
</compile_context>

<pallas_src>
import functools

import jax
import jax.numpy as jnp
from jax.experimental import pallas as pl
from jax.experimental.pallas import tpu as pltpu


def _round_up(x, m):
    return (x + m - 1) // m * m


# ----------------------------- kernel -------------------------------------- #
def _hyper_kernel(state_ref, w1_ref, b1_ref, w2_ref, b2_ref, out_ref,
                  *, relu_cols, abs_cols):
    """z = s@W1+B1; ReLU on first `relu_cols` cols; y = h@W2+B2; abs on first
    `abs_cols` cols; one lane-dense store."""
    s = state_ref[...].astype(jnp.bfloat16)          # bf16 MXU operands, f32 accum

    # ---- fused stage 1: columns [h1_pre(H) | h2_pre(H) | hb2_pre(E) | b1(E)] ----
    z = jnp.dot(s, w1_ref[...], preferred_element_type=jnp.float32) + b1_ref[...]
    zcol = jax.lax.broadcasted_iota(jnp.int32, z.shape, 1)
    h = jnp.where(zcol < relu_cols, jnp.maximum(z, 0.0), z)   # b1 cols pass through

    # ---- fused stage 2 (block-diagonal weights; exact identity block for b1) ----
    y = jnp.dot(h.astype(jnp.bfloat16), w2_ref[...],
                preferred_element_type=jnp.float32) + b2_ref[...]
    ycol = jax.lax.broadcasted_iota(jnp.int32, y.shape, 1)
    out_ref[...] = jnp.where(ycol < abs_cols, jnp.abs(y), y)  # abs only on w1 | w2


# ----------------------------- params --------------------------------------- #
def init_params(key, state_shape, n_agents, hyper_embed_dim, mixing_embed_dim):
    """Deterministic (Xavier-uniform-like) init. Weights stored as (in, out), f32."""
    ks = jax.random.split(key, 14)

    def xavier(k, fan_in, fan_out):
        limit = (6.0 / (fan_in + fan_out)) ** 0.5
        return jax.random.uniform(k, (fan_in, fan_out), jnp.float32, -limit, limit)

    def bias(k, fan_in, n):
        limit = 1.0 / (fan_in ** 0.5)
        return jax.random.uniform(k, (1, n), jnp.float32, -limit, limit)

    S, H, E, A = state_shape, hyper_embed_dim, mixing_embed_dim, n_agents
    return dict(
        # w1_layer: Linear(S,H) -> ReLU -> Linear(H, E*A)
        w1a=xavier(ks[0], S, H),      b1a=bias(ks[1], S, H),
        w1b=xavier(ks[2], H, E * A),  b1b=bias(ks[3], H, E * A),
        # b1_layer: Linear(S, E)
        wb1=xavier(ks[4], S, E),      bb1=bias(ks[5], S, E),
        # w2_layer: Linear(S,H) -> ReLU -> Linear(H, E)
        w2a=xavier(ks[6], S, H),      b2a=bias(ks[7], S, H),
        w2b=xavier(ks[8], H, E),      b2b=bias(ks[9], H, E),
        # b2_layer: Linear(S,E) -> ReLU -> Linear(E, 1)
        wb2a=xavier(ks[10], S, E),    bb2a=bias(ks[11], S, E),
        wb2b=xavier(ks[12], E, 1),    bb2b=bias(ks[13], E, 1),
    )


def _build_fused(params, S, H, E, A):
    """Fused stage-1 / block-diagonal stage-2 weights (bf16) and biases (f32).

    Output slab columns (aligned): [w1 (A*E) | w2 (E) | b1 (E) | b2 (1) | zero pad].
    """
    # Stage 1 columns: [w1a (H) | w2a (H) | wb2a (E) | wb1 (E)]
    W1 = jnp.concatenate(
        [params["w1a"], params["w2a"], params["wb2a"], params["wb1"]], axis=1)
    B1 = jnp.concatenate(
        [params["b1a"], params["b2a"], params["bb2a"], params["bb1"]], axis=1)

    K2 = 2 * H + 2 * E                    # stage-2 contraction dim
    AE = A * E
    out_raw = AE + 2 * E + 1              # [w1 | w2 | b1 | b2]
    OUT_W = _round_up(out_raw, 128)       # lane-dense output slab width

    W2 = jnp.zeros((K2, OUT_W), jnp.float32)
    W2 = W2.at[0:H,             0:AE].set(params["w1b"])                    # -> w1
    W2 = W2.at[H:2 * H,         AE:AE + E].set(params["w2b"])               # -> w2
    W2 = W2.at[2 * H:2 * H + E, AE + 2 * E:AE + 2 * E + 1].set(params["wb2b"])  # -> b2
    W2 = W2.at[2 * H + E:K2,    AE + E:AE + 2 * E].set(
        jnp.eye(E, dtype=jnp.float32))                                      # -> b1 (identity)

    B2 = jnp.zeros((1, OUT_W), jnp.float32)
    B2 = B2.at[:, 0:AE].set(params["b1b"])
    B2 = B2.at[:, AE:AE + E].set(params["b2b"])
    B2 = B2.at[:, AE + 2 * E:AE + 2 * E + 1].set(params["bb2b"])

    # bf16 operands (f32 accumulation in-kernel); identity entries are exact in bf16.
    return W1.astype(jnp.bfloat16), B1, W2.astype(jnp.bfloat16), B2, OUT_W


# ----------------------------- tiling --------------------------------------- #
_MAX_TB = 1024            # rows per grid step; VMEM @1024 ~= 2.5 MiB dbl-buffered
_MIN_ROWS_PER_TILE = 256  # don't split tinier than this (per-step overhead ~0.35us)


def _choose_batch_tile(B):
    n_tiles = max(1, pl.cdiv(B, _MAX_TB))
    if n_tiles == 1 and B >= 2 * _MIN_ROWS_PER_TILE:
        n_tiles = 2               # give both v7x TensorCores work
    if n_tiles > 1 and n_tiles % 2:
        n_tiles += 1              # even grid so 2-TC megacore splits evenly
    return _round_up(pl.cdiv(B, n_tiles), 8)


# ----------------------------- wrapper -------------------------------------- #
def hyper_network_forward(state, params, n_agents, mixing_embed_dim):
    B, S = state.shape
    A, E = n_agents, mixing_embed_dim
    H = params["w1a"].shape[1]
    AE = A * E

    W1, B1, W2, B2, OUT_W = _build_fused(params, S, H, E, A)
    K1 = 2 * H + 2 * E
    relu_cols = 2 * H + E        # last E stage-1 columns are b1 (no relu)
    abs_cols = AE + E            # abs applies to w1 | w2 only

    TB = _choose_batch_tile(B)
    grid = (pl.cdiv(B, TB),)     # ragged last block: Pallas masks OOB writes

    kernel = functools.partial(_hyper_kernel, relu_cols=relu_cols, abs_cols=abs_cols)

    rows = grid[0] * TB
    flops = 2 * rows * S * K1 + 2 * rows * K1 * OUT_W
    bytes_accessed = (4 * B * S + 2 * W1.size + 4 * B1.size
                      + 2 * W2.size + 4 * B2.size + 4 * B * OUT_W)

    slab = pl.pallas_call(
        kernel,
        out_shape=jax.ShapeDtypeStruct((B, OUT_W), jnp.float32),
        grid=grid,
        in_specs=[
            pl.BlockSpec((TB, S), lambda i: (i, 0)),      # state: streamed per tile
            pl.BlockSpec((S, K1), lambda i: (0, 0)),      # fused weights stay VMEM-resident
            pl.BlockSpec((1, K1), lambda i: (0, 0)),
            pl.BlockSpec((K1, OUT_W), lambda i: (0, 0)),
            pl.BlockSpec((1, OUT_W), lambda i: (0, 0)),
        ],
        out_specs=pl.BlockSpec((TB, OUT_W), lambda i: (i, 0)),
        compiler_params=pltpu.CompilerParams(
            dimension_semantics=("parallel",),
            vmem_limit_bytes=32 * 1024 * 1024),           # plenty of headroom, all gens
        cost_estimate=pl.CostEstimate(
            flops=flops, transcendentals=0, bytes_accessed=bytes_accessed),
    )(state, W1, B1, W2, B2)

    # Aligned slab layout -> cheap slices. (Downstream mixer could consume the slab
    # directly to fuse these slices away.)
    w1 = slab[:, 0:AE].reshape(B, A, E)
    w2 = slab[:, AE:AE + E].reshape(B, E, 1)
    b1 = slab[:, AE + E:AE + 2 * E].reshape(B, 1, E)
    b2 = slab[:, AE + 2 * E:AE + 2 * E + 1].reshape(B, 1, 1)
    return {"w1": w1, "b1": b1, "w2": w2, "b2": b2}


# ----------------------------- reference ------------------------------------ #
def _reference_forward(state, params, n_agents, mixing_embed_dim):
    """Plain-JAX f32 reference mirroring the PyTorch module."""
    B = state.shape[0]
    A, E = n_agents, mixing_embed_dim
    relu = lambda x: jnp.maximum(x, 0.0)
    w1 = jnp.abs(relu(state @ params["w1a"] + params["b1a"]) @ params["w1b"] + params["b1b"])
    b1 = state @ params["wb1"] + params["bb1"]
    w2 = jnp.abs(relu(state @ params["w2a"] + params["b2a"]) @ params["w2b"] + params["b2b"])
    b2 = relu(state @ params["wb2a"] + params["bb2a"]) @ params["wb2b"] + params["bb2b"]
    return {
        "w1": w1.reshape(B, A, E),
        "b1": b1.reshape(B, 1, E),
        "w2": w2.reshape(B, E, 1),
        "b2": b2.reshape(B, 1, 1),
    }


if __name__ == "__main__":
    STATE_SHAPE = 32       # state feature dim
    N_AGENTS = 4
    HYPER_EMBED_DIM = 64
    MIXING_EMBED_DIM = 32
    BATCH = 8

    key = jax.random.PRNGKey(0)
    k_state, k_params, k_big = jax.random.split(key, 3)

    params = init_params(k_params, STATE_SHAPE, N_AGENTS, HYPER_EMBED_DIM, MIXING_EMBED_DIM)

    # Tolerance accounts for bf16 MXU operands (f32 accumulation); real layout/fusion
    # bugs would produce O(1) errors, far above this.
    ATOL = RTOL = 5e-2

    # --- small batch (single grid step) ---
    state = jax.random.normal(k_state, (BATCH, STATE_SHAPE), jnp.float32)
    out = hyper_network_forward(state, params, N_AGENTS, MIXING_EMBED_DIM)
    out = jax.tree_util.tree_map(jax.block_until_ready, out)
    ref = _reference_forward(state, params, N_AGENTS, MIXING_EMBED_DIM)
    for name in ("w1", "b1", "w2", "b2"):
        assert out[name].shape == ref[name].shape, (name, out[name].shape, ref[name].shape)
        assert jnp.allclose(out[name], ref[name], atol=ATOL, rtol=RTOL), name

    # --- larger, non-multiple batch: exercises ragged last block (no pad/slice copies) ---
    state_big = jax.random.normal(k_big, (300, STATE_SHAPE), jnp.float32)
    out_big = hyper_network_forward(state_big, params, N_AGENTS, MIXING_EMBED_DIM)
    out_big = jax.tree_util.tree_map(jax.block_until_ready, out_big)
    ref_big = _reference_forward(state_big, params, N_AGENTS, MIXING_EMBED_DIM)
    for name in ("w1", "b1", "w2", "b2"):
        assert out_big[name].shape == ref_big[name].shape, name
        assert jnp.allclose(out_big[name], ref_big[name], atol=ATOL, rtol=RTOL), name

    # --- batch large enough to trigger a 2-step "parallel" grid (v7x megacore path) ---
    state_huge = jax.random.normal(k_big, (600, STATE_SHAPE), jnp.float32)
    out_huge = hyper_network_forward(state_huge, params, N_AGENTS, MIXING_EMBED_DIM)
    out_huge = jax.tree_util.tree_map(jax.block_until_ready, out_huge)
    ref_huge = _reference_forward(state_huge, params, N_AGENTS, MIXING_EMBED_DIM)
    for name in ("w1", "b1", "w2", "b2"):
        assert jnp.allclose(out_huge[name], ref_huge[name], atol=ATOL, rtol=RTOL), name

    print("KERNEL_OK")
</pallas_src>

<mosaic_0001>
module attributes {stable_mosaic.version = 11 : i64} {
  func.func @_hyper_kernel(%arg0: i32, %arg1: memref<8x32xf32, #tpu.memory_space<vmem>>, %arg2: memref<32x192xbf16, #tpu.memory_space<vmem>>, %arg3: memref<1x192xf32, #tpu.memory_space<vmem>>, %arg4: memref<192x256xbf16, #tpu.memory_space<vmem>>, %arg5: memref<1x256xf32, #tpu.memory_space<vmem>>, %arg6: memref<8x256xf32, #tpu.memory_space<vmem>>) attributes {dimension_semantics = [#tpu.dimension_semantics<parallel>], iteration_bounds = array<i64: 1>, scalar_prefetch = 0 : i64, scratch_operands = 0 : i64, tpu.core_type = #tpu.core_type<tc>, window_params = [{transform_indices = @transform_0, window_bounds = array<i64: 8, 32>}, {pipeline_mode = #tpu.pipeline_mode<synchronous>, transform_indices = @transform_1, window_bounds = array<i64: 32, 192>}, {pipeline_mode = #tpu.pipeline_mode<synchronous>, transform_indices = @transform_2, window_bounds = array<i64: 1, 192>}, {pipeline_mode = #tpu.pipeline_mode<synchronous>, transform_indices = @transform_3, window_bounds = array<i64: 192, 256>}, {pipeline_mode = #tpu.pipeline_mode<synchronous>, transform_indices = @transform_4, window_bounds = array<i64: 1, 256>}, {transform_indices = @transform_5, window_bounds = array<i64: 8, 256>}]} {
    %c0 = arith.constant 0 : index
    %c0_0 = arith.constant 0 : index
    %0 = vector.load %arg1[%c0, %c0_0] : memref<8x32xf32, #tpu.memory_space<vmem>>, vector<8x32xf32>
    %1 = arith.truncf %0 : vector<8x32xf32> to vector<8x32xbf16>
    %c0_1 = arith.constant 0 : index
    %c0_2 = arith.constant 0 : index
    %2 = vector.load %arg2[%c0_1, %c0_2] : memref<32x192xbf16, #tpu.memory_space<vmem>>, vector<32x192xbf16>
    %cst = arith.constant dense<0.000000e+00> : vector<8x192xf32>
    %3 = tpu.matmul %1, %2, %cst {dimension_numbers = #tpu.dot_dimension_numbers<[1], [0], [0], [1], [0, 0, 1, 1], [], []>} : vector<8x32xbf16>, vector<32x192xbf16>, vector<8x192xf32> -> vector<8x192xf32>
    %c0_3 = arith.constant 0 : index
    %c0_4 = arith.constant 0 : index
    %4 = vector.load %arg3[%c0_3, %c0_4] : memref<1x192xf32, #tpu.memory_space<vmem>>, vector<1x192xf32>
    %5 = vector.broadcast %4 : vector<1x192xf32> to vector<8x192xf32>
    %6 = arith.addf %3, %5 : vector<8x192xf32>
    %7 = tpu.iota {dimensions = array<i32: 1>} : vector<8x192xi32>
    %c160_i32 = arith.constant 160 : i32
    %8 = vector.broadcast %c160_i32 : i32 to vector<8x192xi32>
    %9 = arith.cmpi slt, %7, %8 : vector<8x192xi32>
    %cst_5 = arith.constant 0.000000e+00 : f32
    %10 = vector.broadcast %cst_5 : f32 to vector<8x192xf32>
    %11 = arith.maximumf %6, %10 : vector<8x192xf32>
    %12 = arith.select %9, %11, %6 : vector<8x192xi1>, vector<8x192xf32>
    %13 = arith.truncf %12 : vector<8x192xf32> to vector<8x192xbf16>
    %c0_6 = arith.constant 0 : index
    %c0_7 = arith.constant 0 : index
    %14 = vector.load %arg4[%c0_6, %c0_7] : memref<192x256xbf16, #tpu.memory_space<vmem>>, vector<192x256xbf16>
    %cst_8 = arith.constant dense<0.000000e+00> : vector<8x256xf32>
    %15 = tpu.matmul %13, %14, %cst_8 {dimension_numbers = #tpu.dot_dimension_numbers<[1], [0], [0], [1], [0, 0, 1, 1], [], []>} : vector<8x192xbf16>, vector<192x256xbf16>, vector<8x256xf32> -> vector<8x256xf32>
    %c0_9 = arith.constant 0 : index
    %c0_10 = arith.constant 0 : index
    %16 = vector.load %arg5[%c0_9, %c0_10] : memref<1x256xf32, #tpu.memory_space<vmem>>, vector<1x256xf32>
    %17 = vector.broadcast %16 : vector<1x256xf32> to vector<8x256xf32>
    %18 = arith.addf %15, %17 : vector<8x256xf32>
    %19 = tpu.iota {dimensions = array<i32: 1>} : vector<8x256xi32>
    %c160_i32_11 = arith.constant 160 : i32
    %20 = vector.broadcast %c160_i32_11 : i32 to vector<8x256xi32>
    %21 = arith.cmpi slt, %19, %20 : vector<8x256xi32>
    %22 = math.absf %18 : vector<8x256xf32>
    %23 = arith.select %21, %22, %18 : vector<8x256xi1>, vector<8x256xf32>
    %c0_12 = arith.constant 0 : index
    %c0_13 = arith.constant 0 : index
    %24 = vector.load %arg6[%c0_12, %c0_13] : memref<8x256xf32, #tpu.memory_space<vmem>>, vector<8x256xf32>
    tpu.vector_store %arg6[%c0_12, %c0_13], %23 {strides = array<i32>} : memref<8x256xf32, #tpu.memory_space<vmem>>, vector<8x256xf32>,
    return
  }
  func.func @transform_0(%arg0: i32) -> (i32, i32) {
    %c0_i32 = arith.constant 0 : i32
    %c0_i32_0 = arith.constant 0 : i32
    return %arg0, %c0_i32 : i32, i32
  }
  func.func @transform_1(%arg0: i32) -> (i32, i32) {
    %c0_i32 = arith.constant 0 : i32
    %c0_i32_0 = arith.constant 0 : i32
    %c0_i32_1 = arith.constant 0 : i32
    return %c0_i32, %c0_i32_0 : i32, i32
  }
  func.func @transform_2(%arg0: i32) -> (i32, i32) {
    %c0_i32 = arith.constant 0 : i32
    %c0_i32_0 = arith.constant 0 : i32
    %c0_i32_1 = arith.constant 0 : i32
    return %c0_i32, %c0_i32_0 : i32, i32
  }
  func.func @transform_3(%arg0: i32) -> (i32, i32) {
    %c0_i32 = arith.constant 0 : i32
    %c0_i32_0 = arith.constant 0 : i32
    %c0_i32_1 = arith.constant 0 : i32
    return %c0_i32, %c0_i32_0 : i32, i32
  }
  func.func @transform_4(%arg0: i32) -> (i32, i32) {
    %c0_i32 = arith.constant 0 : i32
    %c0_i32_0 = arith.constant 0 : i32
    %c0_i32_1 = arith.constant 0 : i32
    return %c0_i32, %c0_i32_0 : i32, i32
  }
  func.func @transform_5(%arg0: i32) -> (i32, i32) {
    %c0_i32 = arith.constant 0 : i32
    %c0_i32_0 = arith.constant 0 : i32
    return %arg0, %c0_i32 : i32, i32
  }
}

</mosaic_0001>

<llo_original>
// kernel: tpu_custom_call.1
$region0: #{tpu_custom_call.1}
  #allocation0 [shape = 'u32[]', space=smem, size = 0x4, offset = 0x4, fixed_abs, tag = 'smem constant byte address 0x4 - core index']
  #allocation1 [shape = 'u32[72,128]{1,0:T(1,128)}', space=vmem, size = 0x9000, scoped, tag = 'internal scratch']
  %s0 = inlined_call_operand.hbm [shape: f32[8,32], index: 0, kind: input, shape index: {}]
  %s1 = inlined_call_operand.hbm [shape: bf16[32,192], index: 1, kind: input, shape index: {}]
  %s2 = inlined_call_operand.hbm [shape: f32[1,192], index: 2, kind: input, shape index: {}]
  %s3 = inlined_call_operand.hbm [shape: bf16[192,256], index: 3, kind: input, shape index: {}]
  %s4 = inlined_call_operand.vmem [shape: f32[1,256], index: 4, kind: input, shape index: {}]
  %s5 = inlined_call_operand.hbm [shape: f32[8,256], index: 5, kind: output, shape index: {}]
  %s6 = sld [smem:[#allocation0]]
  $region46: #{tpu_custom_call.1} parent=0
    _
  %s8 = ssub.s32 1, %s6
  %s9 = scalar_select 0, %s8, %s6
  $region1: #{tpu_custom_call.1} parent=0
    #allocation2 [shape = 'u8[4096]{0}', space=vmem, size = 0x1000, scoped, tag = 'input window, operand 0, single buffered']
    #allocation3 [shape = 's32[1]{0}', space=sflag, size = 0x4, scoped, tag = 'scoped memory for tpu_custom_call.1']
    #allocation4 [shape = 's32[1]{0}', space=sflag, size = 0x4, scoped, tag = 'scoped memory for tpu_custom_call.1']
    #allocation5 [shape = 'u8[16384]{0}', space=vmem, size = 0x4000, scoped, tag = 'input window, operand 1, single buffered']
    #allocation6 [shape = 's32[1]{0}', space=sflag, size = 0x4, scoped, tag = 'scoped memory for tpu_custom_call.1']
    #allocation7 [shape = 'u8[1024]{0}', space=vmem, size = 0x400, scoped, tag = 'input window, operand 2, single buffered']
    #allocation8 [shape = 'u8[98304]{0}', space=vmem, size = 0x18000, scoped, tag = 'input window, operand 3, single buffered']
    #allocation9 [shape = 's32[1]{0}', space=sflag, size = 0x4, scoped, tag = 'scoped memory for tpu_custom_call.1']
    #allocation10 [shape = 'u8[8192]{0}', space=vmem, size = 0x2000, scoped, tag = 'output window, operand 0, single buffered']
    %10 = vsyncpa [#allocation3], 0
    %11 = vsyncpa [#allocation6], 0
    %12 = vsyncpa [#allocation9], 0
    %13 = vsyncpa [#allocation4], 0
    // Predicated region
    $region2: #{tpu_custom_call.1} parent=1 // pred_check
      _
    $region3: #{tpu_custom_call.1} parent=1 // pred_check_branch
      %15 = sbr.rel (0) target = $region5
    $region4: #{tpu_custom_call.1} parent=1 // pred_region
      %17 = vsyncadd [#allocation3], 0
      %s19 = sshll.u32 %s0, 4
      %s20 = int_to_ptr.hbm [resolvable:$true] %s19
      %s21 = sshll.u32 [#allocation2], 4
      %s22 = int_to_ptr.vmem [resolvable:$true] %s21
      %24 = dma.hbm_to_vmem [thread:$0]  %s20, 128, %s22, [#allocation3]
    $region5: #{tpu_custom_call.1} parent=1 // pred_fallthru
      _
    // Predicated region
    $region6: #{tpu_custom_call.1} parent=1 // pred_check
      _
    $region7: #{tpu_custom_call.1} parent=1 // pred_check_branch
      %26 = sbr.rel (0) target = $region9
    $region8: #{tpu_custom_call.1} parent=1 // pred_region
      %28 = vsyncadd [#allocation6], 0
      %s29 = sshll.u32 %s1, 4
      %s30 = int_to_ptr.hbm [resolvable:$true] %s29
      %s31 = sshll.u32 [#allocation5], 4
      %s32 = int_to_ptr.vmem [resolvable:$true] %s31
      %37 = dma.hbm_to_vmem [thread:$0]  %s30, 512, %s32, [#allocation6], 128, 128, 8
    $region9: #{tpu_custom_call.1} parent=1 // pred_fallthru
      _
    // Predicated region
    $region10: #{tpu_custom_call.1} parent=1 // pred_check
      _
    $region11: #{tpu_custom_call.1} parent=1 // pred_check_branch
      %39 = sbr.rel (0) target = $region13
    $region12: #{tpu_custom_call.1} parent=1 // pred_region
      %41 = vsyncadd [#allocation6], 0
      %s43 = sshll.u32 %s2, 4
      %s44 = int_to_ptr.hbm [resolvable:$true] %s43
      %s45 = sshll.u32 [#allocation7], 4
      %s46 = int_to_ptr.vmem [resolvable:$true] %s45
      %48 = dma.hbm_to_vmem [thread:$0]  %s44, 32, %s46, [#allocation6]
    $region13: #{tpu_custom_call.1} parent=1 // pred_fallthru
      _
    // Predicated region
    $region14: #{tpu_custom_call.1} parent=1 // pred_check
      _
    $region15: #{tpu_custom_call.1} parent=1 // pred_check_branch
      %50 = sbr.rel (0) target = $region17
    $region16: #{tpu_custom_call.1} parent=1 // pred_region
      %52 = vsyncadd [#allocation9], 0
      %s53 = sshll.u32 %s3, 4
      %s54 = int_to_ptr.hbm [resolvable:$true] %s53
      %s55 = sshll.u32 [#allocation8], 4
      %s56 = int_to_ptr.vmem [resolvable:$true] %s55
      %61 = dma.hbm_to_vmem [thread:$0]  %s54, 3072, %s56, [#allocation9], 128, 128, 8
    $region17: #{tpu_custom_call.1} parent=1 // pred_fallthru
      _
    // Predicated region
    $region18: #{tpu_custom_call.1} parent=1 // pred_check
      _
    $region19: #{tpu_custom_call.1} parent=1 // pred_check_branch
      %63 = sbr.rel (0) target = $region21
    $region20: #{tpu_custom_call.1} parent=1 // pred_region
      _
    $region21: #{tpu_custom_call.1} parent=1 // pred_fallthru
      _
    // Predicated region
    $region22: #{tpu_custom_call.1} parent=1 // pred_check
      _
    $region23: #{tpu_custom_call.1} parent=1 // pred_check_branch
      %65 = sbr.rel (0) target = $region25
    $region24: #{tpu_custom_call.1} parent=1 // pred_region
      %67 = dma.done [#allocation3], 128
    $region25: #{tpu_custom_call.1} parent=1 // pred_fallthru
      _
    // Predicated region
    $region26: #{tpu_custom_call.1} parent=1 // pred_check
      _
    $region27: #{tpu_custom_call.1} parent=1 // pred_check_branch
      %69 = sbr.rel (0) target = $region29
    $region28: #{tpu_custom_call.1} parent=1 // pred_region
      %71 = dma.done [#allocation6], 512
    $region29: #{tpu_custom_call.1} parent=1 // pred_fallthru
      _
    // Predicated region
    $region30: #{tpu_custom_call.1} parent=1 // pred_check
      _
    $region31: #{tpu_custom_call.1} parent=1 // pred_check_branch
      %73 = sbr.rel (0) target = $region33
    $region32: #{tpu_custom_call.1} parent=1 // pred_region
      %75 = dma.done [#allocation6], 32
    $region33: #{tpu_custom_call.1} parent=1 // pred_fallthru
      _
    // Predicated region
    $region34: #{tpu_custom_call.1} parent=1 // pred_check
      _
    $region35: #{tpu_custom_call.1} parent=1 // pred_check_branch
      %77 = sbr.rel (0) target = $region37
    $region36: #{tpu_custom_call.1} parent=1 // pred_region
      %79 = dma.done [#allocation9], 3072
    $region37: #{tpu_custom_call.1} parent=1 // pred_fallthru
      _
    %v81 = vld [vmem:[#allocation2] sm:$0xff]
    %v82 = vpack.c.bf16 %v81, %v81
    %v83 = vld [vmem:[#allocation5] sm:$0xff]
    %v84 = vld [vmem:[#allocation5 + $0x8] sm:$0xff]
    %v85 = vld [vmem:[#allocation5 + $0x10] sm:$0xff]
    %v86 = vld [vmem:[#allocation5 + $0x18] sm:$0xff]
    %v87 = vld [vmem:[#allocation7] sm:$0x3]
    %v89 = vperm.slane %v87, 0
    %v90 = vperm.slane %v87, 1
    %v97 = vunpack.c.l.b16 %v83
    %v98 = vunpack.c.h.b16 %v83
    %v99 = vunpack.c.l.b16 %v84
    %v100 = vunpack.c.h.b16 %v84
    %v101 = vunpack.c.l.b16 %v85
    %v102 = vunpack.c.h.b16 %v85
    %v103 = vunpack.c.l.b16 %v86
    %v104 = vunpack.c.h.b16 %v86
    %v105 = vpack.c.b16 %v99, %v97
    %v106 = vpack.c.b16 %v100, %v98
    %v107 = vpack.c.b16 %v103, %v101
    %v108 = vpack.c.b16 %v104, %v102
    %vm113 = vcmask 261120
    %v115 = vsel %vm113, %v82, 0
    %117 = vmatpush.bf16.msra.mxu0 0
    %118 = vmatpush.bf16.msra.mxu0 0
    %119 = vmatpush.bf16.msra.mxu0 0
    %120 = vmatpush.bf16.msra.mxu0 0
    %121 = vmatpush.bf16.msra.mxu0 0
    %122 = vmatpush.bf16.msra.mxu0 0
    %123 = vmatpush.bf16.msra.mxu0 %v107
    %124 = vmatpush.bf16.msra.mxu0 %v105
    %125 = vmatmul.bf16.gmra.mxu0 %v115
    %v126 = vpop.f32.mrf.mxu0
    %v127 = vadd.f32 %v89, %v126
    %v128 = vpop.f32.mrf.mxu0
    %129 = vdwg.mxu0
    %130 = vmatpush.bf16.msra.mxu0 0
    %131 = vmatpush.bf16.msra.mxu0 0
    %132 = vmatpush.bf16.msra.mxu0 0
    %133 = vmatpush.bf16.msra.mxu0 0
    %134 = vmatpush.bf16.msra.mxu0 0
    %135 = vmatpush.bf16.msra.mxu0 0
    %136 = vmatpush.bf16.msra.mxu0 %v108
    %137 = vmatpush.bf16.msra.mxu0 %v106
    %138 = vmatmul.bf16.gmra.mxu0 %v115
    %v139 = vpop.f32.mrf.mxu0
    %v140 = vadd.f32 %v90, %v139
    %v141 = vpop.f32.mrf.mxu0
    %142 = vdwg.mxu0
    %v143 = vlaneseq
    %v144 = vand.u32 %v143, 127
    %v145 = vadd.s32 %v144, 128
    %vm146 = vcmp.lt.s32.totalorder %v144, 160
    %vm147 = vcmp.lt.s32.totalorder %v145, 160
    %v148 = vmax.f32 %v127, 0.0
    %v149 = vmax.f32 %v140, 0.0
    %v150 = vsel %vm146, %v148, %v127
    %v151 = vsel %vm147, %v149, %v140
    %v152 = vpack.c.bf16 %v150, %v150
    %v153 = vpack.c.bf16 %v151, %v151
    %v154 = vld [vmem:[#allocation8] sm:$0xff]
    %v155 = vld [vmem:[#allocation8 + $0x8] sm:$0xff]
    %v156 = vld [vmem:[#allocation8 + $0x10] sm:$0xff]
    %v157 = vld [vmem:[#allocation8 + $0x18] sm:$0xff]
    %v158 = vld [vmem:[#allocation8 + $0x20] sm:$0xff]
    %v159 = vld [vmem:[#allocation8 + $0x28] sm:$0xff]
    %v160 = vld [vmem:[#allocation8 + $0x30] sm:$0xff]
    %v161 = vld [vmem:[#allocation8 + $0x38] sm:$0xff]
    %v162 = vld [vmem:[#allocation8 + $0x40] sm:$0xff]
    %v163 = vld [vmem:[#allocation8 + $0x48] sm:$0xff]
    %v164 = vld [vmem:[#allocation8 + $0x50] sm:$0xff]
    %v165 = vld [vmem:[#allocation8 + $0x58] sm:$0xff]
    %v166 = vld [vmem:[#allocation8 + $0x60] sm:$0xff]
    %v167 = vld [vmem:[#allocation8 + $0x68] sm:$0xff]
    %v168 = vld [vmem:[#allocation8 + $0x70] sm:$0xff]
    %v169 = vld [vmem:[#allocation8 + $0x78] sm:$0xff]
    %v170 = vld [vmem:[#allocation8 + $0x80] sm:$0xff]
    %v171 = vld [vmem:[#allocation8 + $0x88] sm:$0xff]
    %v172 = vld [vmem:[#allocation8 + $0x90] sm:$0xff]
    %v173 = vld [vmem:[#allocation8 + $0x98] sm:$0xff]
    %v174 = vld [vmem:[#allocation8 + $0xa0] sm:$0xff]
    %v175 = vld [vmem:[#allocation8 + $0xa8] sm:$0xff]
    %v176 = vld [vmem:[#allocation8 + $0xb0] sm:$0xff]
    %v177 = vld [vmem:[#allocation8 + $0xb8] sm:$0xff]
    %v178 = vld [vmem:[%s4] sm:$0x3]
    %v180 = vperm.slane %v178, 0
    %v181 = vperm.slane %v178, 1
    %v208 = vunpack.c.l.b16 %v154
    %v209 = vunpack.c.h.b16 %v154
    %v210 = vunpack.c.l.b16 %v155
    %v211 = vunpack.c.h.b16 %v155
    %v212 = vunpack.c.l.b16 %v156
    %v213 = vunpack.c.h.b16 %v156
    %v214 = vunpack.c.l.b16 %v157
    %v215 = vunpack.c.h.b16 %v157
    %v216 = vunpack.c.l.b16 %v158
    %v217 = vunpack.c.h.b16 %v158
    %v218 = vunpack.c.l.b16 %v159
    %v219 = vunpack.c.h.b16 %v159
    %v220 = vunpack.c.l.b16 %v160
    %v221 = vunpack.c.h.b16 %v160
    %v222 = vunpack.c.l.b16 %v161
    %v223 = vunpack.c.h.b16 %v161
    %v224 = vunpack.c.l.b16 %v162
    %v225 = vunpack.c.h.b16 %v162
    %v226 = vunpack.c.l.b16 %v163
    %v227 = vunpack.c.h.b16 %v163
    %v228 = vunpack.c.l.b16 %v164
    %v229 = vunpack.c.h.b16 %v164
    %v230 = vunpack.c.l.b16 %v165
    %v231 = vunpack.c.h.b16 %v165
    %v232 = vunpack.c.l.b16 %v166
    %v233 = vunpack.c.h.b16 %v166
    %v234 = vunpack.c.l.b16 %v167
    %v235 = vunpack.c.h.b16 %v167
    %v236 = vunpack.c.l.b16 %v168
    %v237 = vunpack.c.h.b16 %v168
    %v238 = vunpack.c.l.b16 %v169
    %v239 = vunpack.c.h.b16 %v169
    %v240 = vunpack.c.l.b16 %v170
    %v241 = vunpack.c.h.b16 %v170
    %v242 = vunpack.c.l.b16 %v171
    %v243 = vunpack.c.h.b16 %v171
    %v244 = vunpack.c.l.b16 %v172
    %v245 = vunpack.c.h.b16 %v172
    %v246 = vunpack.c.l.b16 %v173
    %v247 = vunpack.c.h.b16 %v173
    %v248 = vunpack.c.l.b16 %v174
    %v249 = vunpack.c.h.b16 %v174
    %v250 = vunpack.c.l.b16 %v175
    %v251 = vunpack.c.h.b16 %v175
    %v252 = vunpack.c.l.b16 %v176
    %v253 = vunpack.c.h.b16 %v176
    %v254 = vunpack.c.l.b16 %v177
    %v255 = vunpack.c.h.b16 %v177
    %v256 = vpack.c.b16 %v210, %v208
    %v257 = vpack.c.b16 %v211, %v209
    %v258 = vpack.c.b16 %v214, %v212
    %v259 = vpack.c.b16 %v215, %v213
    %v260 = vpack.c.b16 %v218, %v216
    %v261 = vpack.c.b16 %v219, %v217
    %v262 = vpack.c.b16 %v222, %v220
    %v263 = vpack.c.b16 %v223, %v221
    %v264 = vpack.c.b16 %v226, %v224
    %v265 = vpack.c.b16 %v227, %v225
    %v266 = vpack.c.b16 %v230, %v228
    %v267 = vpack.c.b16 %v231, %v229
    %v268 = vpack.c.b16 %v234, %v232
    %v269 = vpack.c.b16 %v235, %v233
    %v270 = vpack.c.b16 %v238, %v236
    %v271 = vpack.c.b16 %v239, %v237
    %v272 = vpack.c.b16 %v242, %v240
    %v273 = vpack.c.b16 %v243, %v241
    %v274 = vpack.c.b16 %v246, %v244
    %v275 = vpack.c.b16 %v247, %v245
    %v276 = vpack.c.b16 %v250, %v248
    %v277 = vpack.c.b16 %v251, %v249
    %v278 = vpack.c.b16 %v254, %v252
    %v279 = vpack.c.b16 %v255, %v253
    %vm304 = vcmask 523264
    %v306 = vsel %vm304, %v153, 0
    %308 = vmatpush.bf16.msra.mxu0 %v270
    %309 = vmatpush.bf16.msra.mxu0 %v268
    %310 = vmatpush.bf16.msra.mxu0 %v266
    %311 = vmatpush.bf16.msra.mxu0 %v264
    %312 = vmatpush.bf16.msra.mxu0 %v262
    %313 = vmatpush.bf16.msra.mxu0 %v260
    %314 = vmatpush.bf16.msra.mxu0 %v258
    %315 = vmatpush.bf16.msra.mxu0 %v256
    %316 = vmatmul.bf16.gmra.mxu0 %v152
    %v317 = vpop.f32.mrf.mxu0
    %v318 = vadd.f32 %v180, %v317
    %v319 = vpop.f32.mrf.mxu0
    %320 = vdwg.mxu0
    %321 = vmatpush.bf16.msra.mxu0 0
    %322 = vmatpush.bf16.msra.mxu0 0
    %323 = vmatpush.bf16.msra.mxu0 0
    %324 = vmatpush.bf16.msra.mxu0 0
    %325 = vmatpush.bf16.msra.mxu0 %v278
    %326 = vmatpush.bf16.msra.mxu0 %v276
    %327 = vmatpush.bf16.msra.mxu0 %v274
    %328 = vmatpush.bf16.msra.mxu0 %v272
    %329 = vmatmul.bf16.gmra.mxu0 %v306
    %v330 = vpop.f32.mrf.mxu0
    %v331 = vadd.f32 %v318, %v330
    %v332 = vpop.f32.mrf.mxu0
    %333 = vdwg.mxu0
    %334 = vmatpush.bf16.msra.mxu0 %v271
    %335 = vmatpush.bf16.msra.mxu0 %v269
    %336 = vmatpush.bf16.msra.mxu0 %v267
    %337 = vmatpush.bf16.msra.mxu0 %v265
    %338 = vmatpush.bf16.msra.mxu0 %v263
    %339 = vmatpush.bf16.msra.mxu0 %v261
    %340 = vmatpush.bf16.msra.mxu0 %v259
    %341 = vmatpush.bf16.msra.mxu0 %v257
    %342 = vmatmul.bf16.gmra.mxu0 %v152
    %v343 = vpop.f32.mrf.mxu0
    %v344 = vadd.f32 %v181, %v343
    %v345 = vpop.f32.mrf.mxu0
    %346 = vdwg.mxu0
    %347 = vmatpush.bf16.msra.mxu0 0
    %348 = vmatpush.bf16.msra.mxu0 0
    %349 = vmatpush.bf16.msra.mxu0 0
    %350 = vmatpush.bf16.msra.mxu0 0
    %351 = vmatpush.bf16.msra.mxu0 %v279
    %352 = vmatpush.bf16.msra.mxu0 %v277
    %353 = vmatpush.bf16.msra.mxu0 %v275
    %354 = vmatpush.bf16.msra.mxu0 %v273
    %355 = vmatmul.bf16.gmra.mxu0 %v306
    %v356 = vpop.f32.mrf.mxu0
    %v357 = vadd.f32 %v344, %v356
    %v358 = vpop.f32.mrf.mxu0
    %359 = vdwg.mxu0
    %v360 = vand.u32 2147483647, %v331
    %v361 = vand.u32 2147483647, %v357
    %v362 = vsel %vm146, %v360, %v331
    %v363 = vsel %vm147, %v361, %v357
    %364 = vst [vmem:[#allocation10] sm:$0xff] %v362
    %365 = vst [vmem:[#allocation10 + $0x8] sm:$0xff] %v363
    // Predicated region
    $region38: #{tpu_custom_call.1} parent=1 // pred_check
      _
    $region39: #{tpu_custom_call.1} parent=1 // pred_check_branch
      %367 = sbr.rel (0) target = $region41
    $region40: #{tpu_custom_call.1} parent=1 // pred_region
      %369 = vsyncadd [#allocation4], 0
      %s371 = sshll.u32 [#allocation10], 4
      %s372 = int_to_ptr.vmem [resolvable:$true] %s371
      %s373 = sshll.u32 %s5, 4
      %s374 = int_to_ptr.hbm [resolvable:$true] %s373
      %376 = dma.vmem_to_hbm [thread:$0]  %s372, 256, %s374, [#allocation4]
    $region41: #{tpu_custom_call.1} parent=1 // pred_fallthru
      _
    // Predicated region
    $region42: #{tpu_custom_call.1} parent=1 // pred_check
      _
    $region43: #{tpu_custom_call.1} parent=1 // pred_check_branch
      %378 = sbr.rel (0) target = $region45
    $region44: #{tpu_custom_call.1} parent=1 // pred_region
      %380 = dma.done [#allocation4], 256
    $region45: #{tpu_custom_call.1} parent=1 // pred_fallthru
      _
    %381 = vsyncpa [#allocation3], 1
    %382 = vsyncpa [#allocation6], 1
    %383 = vsyncpa [#allocation9], 1
    %384 = vsyncpa [#allocation4], 1

</llo_original>
